<compile_context>
chip_gen: v7x
topology: tpu7x:2x2x1
jax: 0.10.0
libtpu: 0.0.40
codegen_flags: <defaults>
</compile_context>

<pallas_src>
import jax
import jax.numpy as jnp
from jax.experimental import pallas as pl
from jax.experimental.pallas import tpu as pltpu

HIDDEN = 128
LANE = 128


def _round_up(a, m):
    return ((a + m - 1) // m) * m


def _make_dqn_kernel(n_obs, fma_first_layer):
    def kernel(x_ref, w1_ref, b1_ref, w2_ref, b2_ref, w3_ref, b3_ref, o_ref):
        x = x_ref[...]

        if fma_first_layer:
            # K = n_obs is tiny: n_obs broadcast-FMAs on the VPU beat a near-empty MXU pass.
            xf = x.astype(jnp.float32)
            h1 = jnp.broadcast_to(b1_ref[...], (x.shape[0], HIDDEN))
            for k in range(n_obs):  # static unroll (n_obs is a Python int)
                h1 = h1 + xf[:, k:k + 1] * w1_ref[k:k + 1, :].astype(jnp.float32)
        else:
            h1 = jnp.dot(x, w1_ref[...], preferred_element_type=jnp.float32)
            h1 = h1 + b1_ref[...]
        h1 = jnp.maximum(h1, 0.0)  # f32 ReLU (v5e VPU has no bf16 ALU)

        h2 = jnp.dot(h1.astype(w2_ref.dtype), w2_ref[...],
                     preferred_element_type=jnp.float32)
        h2 = jnp.maximum(h2 + b2_ref[...], 0.0)

        out = jnp.dot(h2.astype(w3_ref.dtype), w3_ref[...],
                      preferred_element_type=jnp.float32)
        # Lane-dense (TB, 128*k) store: unmasked full vst.
        o_ref[...] = (out + b3_ref[...]).astype(o_ref.dtype)

    return kernel


def dqn_forward(x, params, *, compute_dtype=jnp.float32):
    """x: (B, n_observations) f32. params: dict of w1,b1,w2,b2,w3,b3 (f32)."""
    w1, b1 = params["w1"], params["b1"]
    w2, b2 = params["w2"], params["b2"]
    w3, b3 = params["w3"], params["b3"]

    B, n_obs = x.shape
    n_actions = w3.shape[1]

    # --- Lane-dense padded output width (multiple of 128). ---
    n_out = _round_up(max(n_actions, LANE), LANE)
    if n_out != n_actions:
        w3 = jnp.pad(w3, ((0, 0), (0, n_out - n_actions)))
        b3 = jnp.pad(b3, ((0, 0), (0, n_out - n_actions)))

    # --- Batch tiling: TB multiple of 8; 256 rows when batch is large (fills MXU). ---
    b8 = _round_up(B, 8)
    TB = 256 if b8 >= 256 else b8
    B_pad = _round_up(b8, TB)
    if B_pad != B:
        x = jnp.pad(x, ((0, B_pad - B), (0, 0)))

    # Optional bf16 MXU operands (f32 accumulation in-kernel; biases stay f32).
    x_in = x.astype(compute_dtype)
    w1_in = w1.astype(compute_dtype)
    w2_in = w2.astype(compute_dtype)
    w3_in = w3.astype(compute_dtype)

    grid = (B_pad // TB,)
    fma_first_layer = n_obs <= 16
    kernel = _make_dqn_kernel(n_obs, fma_first_layer)

    flops = 2 * B_pad * (n_obs * HIDDEN + HIDDEN * HIDDEN + HIDDEN * n_out)
    bytes_accessed = (
        x_in.size * x_in.dtype.itemsize
        + sum(int(a.size) * a.dtype.itemsize for a in (w1_in, b1, w2_in, b2, w3_in, b3))
        + B_pad * n_out * 4
    )

    out_padded = pl.pallas_call(
        kernel,
        out_shape=jax.ShapeDtypeStruct((B_pad, n_out), jnp.float32),
        grid=grid,
        in_specs=[
            pl.BlockSpec((TB, n_obs), lambda i: (i, 0)),       # x: tiled along batch
            pl.BlockSpec((n_obs, HIDDEN), lambda i: (0, 0)),   # w1: VMEM-resident
            pl.BlockSpec((1, HIDDEN), lambda i: (0, 0)),       # b1
            pl.BlockSpec((HIDDEN, HIDDEN), lambda i: (0, 0)),  # w2
            pl.BlockSpec((1, HIDDEN), lambda i: (0, 0)),       # b2
            pl.BlockSpec((HIDDEN, n_out), lambda i: (0, 0)),   # w3 (padded to 128 cols)
            pl.BlockSpec((1, n_out), lambda i: (0, 0)),        # b3 (padded)
        ],
        out_specs=pl.BlockSpec((TB, n_out), lambda i: (i, 0)),
        compiler_params=pltpu.CompilerParams(
            dimension_semantics=("parallel",)),
        cost_estimate=pl.CostEstimate(
            flops=flops, transcendentals=0, bytes_accessed=bytes_accessed),
    )(x_in, w1_in, b1, w2_in, b2, w3_in, b3)

    return out_padded[:B, :n_actions]


def init_params(key, n_observations, n_actions):
    """Deterministic synthetic init matching nn.Linear shapes (weights stored transposed)."""
    k1, k2, k3, k4, k5, k6 = jax.random.split(key, 6)
    scale1 = 1.0 / jnp.sqrt(n_observations)
    scale2 = 1.0 / jnp.sqrt(HIDDEN)
    return {
        "w1": jax.random.uniform(k1, (n_observations, HIDDEN), jnp.float32, -scale1, scale1),
        "b1": jax.random.uniform(k2, (1, HIDDEN), jnp.float32, -scale1, scale1),
        "w2": jax.random.uniform(k3, (HIDDEN, HIDDEN), jnp.float32, -scale2, scale2),
        "b2": jax.random.uniform(k4, (1, HIDDEN), jnp.float32, -scale2, scale2),
        "w3": jax.random.uniform(k5, (HIDDEN, n_actions), jnp.float32, -scale2, scale2),
        "b3": jax.random.uniform(k6, (1, n_actions), jnp.float32, -scale2, scale2),
    }


def _reference_forward(x, params):
    h = jnp.maximum(x @ params["w1"] + params["b1"], 0.0)
    h = jnp.maximum(h @ params["w2"] + params["b2"], 0.0)
    return h @ params["w3"] + params["b3"]


# TODO(synk): save_network/load_network (torch checkpoint I/O) have no Pallas equivalent.

if __name__ == "__main__":
    key = jax.random.PRNGKey(0)
    n_observations, n_actions, batch = 4, 2, 8

    kx, kp = jax.random.split(key)
    x = jax.random.normal(kx, (batch, n_observations), jnp.float32)
    params = init_params(kp, n_observations, n_actions)

    out = dqn_forward(x, params)  # f32 compute: matches the PyTorch forward numerics
    jax.block_until_ready(out)

    ref = _reference_forward(x, params)
    assert out.shape == (batch, n_actions)
    assert jnp.allclose(out, ref, atol=1e-5, rtol=1e-5)

    # Also exercise a larger, tiled batch (TB=256, multi-step grid) to validate the pipeline.
    big_b = 600
    xb = jax.random.normal(kx, (big_b, n_observations), jnp.float32)
    outb = dqn_forward(xb, params)
    jax.block_until_ready(outb)
    refb = _reference_forward(xb, params)
    assert outb.shape == (big_b, n_actions)
    assert jnp.allclose(outb, refb, atol=1e-5, rtol=1e-5)

    print("KERNEL_OK")
</pallas_src>

<mosaic_0001>
module attributes {stable_mosaic.version = 11 : i64} {
  func.func @kernel(%arg0: i32, %arg1: memref<8x4xf32, #tpu.memory_space<vmem>>, %arg2: memref<4x128xf32, #tpu.memory_space<vmem>>, %arg3: memref<1x128xf32, #tpu.memory_space<vmem>>, %arg4: memref<128x128xf32, #tpu.memory_space<vmem>>, %arg5: memref<1x128xf32, #tpu.memory_space<vmem>>, %arg6: memref<128x128xf32, #tpu.memory_space<vmem>>, %arg7: memref<1x128xf32, #tpu.memory_space<vmem>>, %arg8: memref<8x128xf32, #tpu.memory_space<vmem>>) attributes {dimension_semantics = [#tpu.dimension_semantics<parallel>], iteration_bounds = array<i64: 1>, scalar_prefetch = 0 : i64, scratch_operands = 0 : i64, tpu.core_type = #tpu.core_type<tc>, window_params = [{transform_indices = @transform_0, window_bounds = array<i64: 8, 4>}, {pipeline_mode = #tpu.pipeline_mode<synchronous>, transform_indices = @transform_1, window_bounds = array<i64: 4, 128>}, {pipeline_mode = #tpu.pipeline_mode<synchronous>, transform_indices = @transform_2, window_bounds = array<i64: 1, 128>}, {pipeline_mode = #tpu.pipeline_mode<synchronous>, transform_indices = @transform_3, window_bounds = array<i64: 128, 128>}, {pipeline_mode = #tpu.pipeline_mode<synchronous>, transform_indices = @transform_4, window_bounds = array<i64: 1, 128>}, {pipeline_mode = #tpu.pipeline_mode<synchronous>, transform_indices = @transform_5, window_bounds = array<i64: 128, 128>}, {pipeline_mode = #tpu.pipeline_mode<synchronous>, transform_indices = @transform_6, window_bounds = array<i64: 1, 128>}, {transform_indices = @transform_7, window_bounds = array<i64: 8, 128>}]} {
    %c0 = arith.constant 0 : index
    %c0_0 = arith.constant 0 : index
    %0 = vector.load %arg1[%c0, %c0_0] : memref<8x4xf32, #tpu.memory_space<vmem>>, vector<8x4xf32>
    %c0_1 = arith.constant 0 : index
    %c0_2 = arith.constant 0 : index
    %1 = vector.load %arg3[%c0_1, %c0_2] : memref<1x128xf32, #tpu.memory_space<vmem>>, vector<1x128xf32>
    %2 = vector.shape_cast %1 : vector<1x128xf32> to vector<1x128xf32>
    %3 = vector.broadcast %2 : vector<1x128xf32> to vector<8x128xf32>
    %4 = vector.extract_strided_slice %0 {offsets = [0, 0], sizes = [8, 1], strides = [1, 1]} : vector<8x4xf32> to vector<8x1xf32>
    %c0_3 = arith.constant 0 : index
    %c0_4 = arith.constant 0 : index
    %5 = vector.load %arg2[%c0_3, %c0_4] : memref<4x128xf32, #tpu.memory_space<vmem>>, vector<1x128xf32>
    %6 = vector.broadcast %4 : vector<8x1xf32> to vector<8x128xf32>
    %7 = vector.broadcast %5 : vector<1x128xf32> to vector<8x128xf32>
    %8 = arith.mulf %6, %7 : vector<8x128xf32>
    %9 = arith.addf %3, %8 : vector<8x128xf32>
    %10 = vector.extract_strided_slice %0 {offsets = [0, 1], sizes = [8, 1], strides = [1, 1]} : vector<8x4xf32> to vector<8x1xf32>
    %c1 = arith.constant 1 : index
    %c0_5 = arith.constant 0 : index
    %11 = vector.load %arg2[%c1, %c0_5] : memref<4x128xf32, #tpu.memory_space<vmem>>, vector<1x128xf32>
    %12 = vector.broadcast %10 : vector<8x1xf32> to vector<8x128xf32>
    %13 = vector.broadcast %11 : vector<1x128xf32> to vector<8x128xf32>
    %14 = arith.mulf %12, %13 : vector<8x128xf32>
    %15 = arith.addf %9, %14 : vector<8x128xf32>
    %16 = vector.extract_strided_slice %0 {offsets = [0, 2], sizes = [8, 1], strides = [1, 1]} : vector<8x4xf32> to vector<8x1xf32>
    %c2 = arith.constant 2 : index
    %c0_6 = arith.constant 0 : index
    %17 = vector.load %arg2[%c2, %c0_6] : memref<4x128xf32, #tpu.memory_space<vmem>>, vector<1x128xf32>
    %18 = vector.broadcast %16 : vector<8x1xf32> to vector<8x128xf32>
    %19 = vector.broadcast %17 : vector<1x128xf32> to vector<8x128xf32>
    %20 = arith.mulf %18, %19 : vector<8x128xf32>
    %21 = arith.addf %15, %20 : vector<8x128xf32>
    %22 = vector.extract_strided_slice %0 {offsets = [0, 3], sizes = [8, 1], strides = [1, 1]} : vector<8x4xf32> to vector<8x1xf32>
    %c3 = arith.constant 3 : index
    %c0_7 = arith.constant 0 : index
    %23 = vector.load %arg2[%c3, %c0_7] : memref<4x128xf32, #tpu.memory_space<vmem>>, vector<1x128xf32>
    %24 = vector.broadcast %22 : vector<8x1xf32> to vector<8x128xf32>
    %25 = vector.broadcast %23 : vector<1x128xf32> to vector<8x128xf32>
    %26 = arith.mulf %24, %25 : vector<8x128xf32>
    %27 = arith.addf %21, %26 : vector<8x128xf32>
    %cst = arith.constant 0.000000e+00 : f32
    %28 = vector.broadcast %cst : f32 to vector<8x128xf32>
    %29 = arith.maximumf %27, %28 : vector<8x128xf32>
    %c0_8 = arith.constant 0 : index
    %c0_9 = arith.constant 0 : index
    %30 = vector.load %arg4[%c0_8, %c0_9] : memref<128x128xf32, #tpu.memory_space<vmem>>, vector<128x128xf32>
    %cst_10 = arith.constant dense<0.000000e+00> : vector<8x128xf32>
    %31 = tpu.matmul %29, %30, %cst_10 {dimension_numbers = #tpu.dot_dimension_numbers<[1], [0], [0], [1], [0, 0, 1, 1], [], []>} : vector<8x128xf32>, vector<128x128xf32>, vector<8x128xf32> -> vector<8x128xf32>
    %c0_11 = arith.constant 0 : index
    %c0_12 = arith.constant 0 : index
    %32 = vector.load %arg5[%c0_11, %c0_12] : memref<1x128xf32, #tpu.memory_space<vmem>>, vector<1x128xf32>
    %33 = vector.broadcast %32 : vector<1x128xf32> to vector<8x128xf32>
    %34 = arith.addf %31, %33 : vector<8x128xf32>
    %cst_13 = arith.constant 0.000000e+00 : f32
    %35 = vector.broadcast %cst_13 : f32 to vector<8x128xf32>
    %36 = arith.maximumf %34, %35 : vector<8x128xf32>
    %c0_14 = arith.constant 0 : index
    %c0_15 = arith.constant 0 : index
    %37 = vector.load %arg6[%c0_14, %c0_15] : memref<128x128xf32, #tpu.memory_space<vmem>>, vector<128x128xf32>
    %cst_16 = arith.constant dense<0.000000e+00> : vector<8x128xf32>
    %38 = tpu.matmul %36, %37, %cst_16 {dimension_numbers = #tpu.dot_dimension_numbers<[1], [0], [0], [1], [0, 0, 1, 1], [], []>} : vector<8x128xf32>, vector<128x128xf32>, vector<8x128xf32> -> vector<8x128xf32>
    %c0_17 = arith.constant 0 : index
    %c0_18 = arith.constant 0 : index
    %39 = vector.load %arg7[%c0_17, %c0_18] : memref<1x128xf32, #tpu.memory_space<vmem>>, vector<1x128xf32>
    %40 = vector.broadcast %39 : vector<1x128xf32> to vector<8x128xf32>
    %41 = arith.addf %38, %40 : vector<8x128xf32>
    %c0_19 = arith.constant 0 : index
    %c0_20 = arith.constant 0 : index
    %42 = vector.load %arg8[%c0_19, %c0_20] : memref<8x128xf32, #tpu.memory_space<vmem>>, vector<8x128xf32>
    tpu.vector_store %arg8[%c0_19, %c0_20], %41 {strides = array<i32>} : memref<8x128xf32, #tpu.memory_space<vmem>>, vector<8x128xf32>,
    return
  }
  func.func @transform_0(%arg0: i32) -> (i32, i32) {
    %c0_i32 = arith.constant 0 : i32
    %c0_i32_0 = arith.constant 0 : i32
    return %arg0, %c0_i32 : i32, i32
  }
  func.func @transform_1(%arg0: i32) -> (i32, i32) {
    %c0_i32 = arith.constant 0 : i32
    %c0_i32_0 = arith.constant 0 : i32
    %c0_i32_1 = arith.constant 0 : i32
    return %c0_i32, %c0_i32_0 : i32, i32
  }
  func.func @transform_2(%arg0: i32) -> (i32, i32) {
    %c0_i32 = arith.constant 0 : i32
    %c0_i32_0 = arith.constant 0 : i32
    %c0_i32_1 = arith.constant 0 : i32
    return %c0_i32, %c0_i32_0 : i32, i32
  }
  func.func @transform_3(%arg0: i32) -> (i32, i32) {
    %c0_i32 = arith.constant 0 : i32
    %c0_i32_0 = arith.constant 0 : i32
    %c0_i32_1 = arith.constant 0 : i32
    return %c0_i32, %c0_i32_0 : i32, i32
  }
  func.func @transform_4(%arg0: i32) -> (i32, i32) {
    %c0_i32 = arith.constant 0 : i32
    %c0_i32_0 = arith.constant 0 : i32
    %c0_i32_1 = arith.constant 0 : i32
    return %c0_i32, %c0_i32_0 : i32, i32
  }
  func.func @transform_5(%arg0: i32) -> (i32, i32) {
    %c0_i32 = arith.constant 0 : i32
    %c0_i32_0 = arith.constant 0 : i32
    %c0_i32_1 = arith.constant 0 : i32
    return %c0_i32, %c0_i32_0 : i32, i32
  }
  func.func @transform_6(%arg0: i32) -> (i32, i32) {
    %c0_i32 = arith.constant 0 : i32
    %c0_i32_0 = arith.constant 0 : i32
    %c0_i32_1 = arith.constant 0 : i32
    return %c0_i32, %c0_i32_0 : i32, i32
  }
  func.func @transform_7(%arg0: i32) -> (i32, i32) {
    %c0_i32 = arith.constant 0 : i32
    %c0_i32_0 = arith.constant 0 : i32
    return %arg0, %c0_i32 : i32, i32
  }
}

</mosaic_0001>

<llo_original>
// kernel: tpu_custom_call.1
$region0: #{tpu_custom_call.1}
  #allocation0 [shape = 'u32[]', space=smem, size = 0x4, offset = 0x4, fixed_abs, tag = 'smem constant byte address 0x4 - core index']
  #allocation1 [shape = 'u32[144,128]{1,0:T(1,128)}', space=vmem, size = 0x12000, scoped, tag = 'internal scratch']
  %s0 = inlined_call_operand.vmem [shape: f32[8,4], index: 0, kind: input, shape index: {}]
  %s1 = inlined_call_operand.vmem [shape: f32[4,128], index: 1, kind: input, shape index: {}]
  %s2 = inlined_call_operand.vmem [shape: f32[1,128], index: 2, kind: input, shape index: {}]
  %s3 = inlined_call_operand.hbm [shape: f32[128,128], index: 3, kind: input, shape index: {}]
  %s4 = inlined_call_operand.vmem [shape: f32[1,128], index: 4, kind: input, shape index: {}]
  %s5 = inlined_call_operand.hbm [shape: f32[128,128], index: 5, kind: input, shape index: {}]
  %s6 = inlined_call_operand.vmem [shape: f32[1,128], index: 6, kind: input, shape index: {}]
  %s7 = inlined_call_operand.hbm [shape: f32[8,128], index: 7, kind: output, shape index: {}]
  %s8 = sld [smem:[#allocation0]]
  $region46: #{tpu_custom_call.1} parent=0
    _
  %s10 = ssub.s32 1, %s8
  %s11 = scalar_select 0, %s10, %s8
  $region1: #{tpu_custom_call.1} parent=0
    #allocation2 [shape = 'u8[65536]{0}', space=vmem, size = 0x10000, scoped, tag = 'input window, operand 3, single buffered']
    #allocation3 [shape = 's32[1]{0}', space=sflag, size = 0x4, scoped, tag = 'scoped memory for tpu_custom_call.1']
    #allocation4 [shape = 's32[1]{0}', space=sflag, size = 0x4, scoped, tag = 'scoped memory for tpu_custom_call.1']
    #allocation5 [shape = 'u8[65536]{0}', space=vmem, size = 0x10000, scoped, tag = 'input window, operand 5, single buffered']
    #allocation6 [shape = 's32[1]{0}', space=sflag, size = 0x4, scoped, tag = 'scoped memory for tpu_custom_call.1']
    #allocation7 [shape = 'u8[4096]{0}', space=vmem, size = 0x1000, scoped, tag = 'output window, operand 0, single buffered']
    %12 = vsyncpa [#allocation3], 0
    %13 = vsyncpa [#allocation6], 0
    %14 = vsyncpa [#allocation4], 0
    // Predicated region
    $region2: #{tpu_custom_call.1} parent=1 // pred_check
      _
    $region3: #{tpu_custom_call.1} parent=1 // pred_check_branch
      %16 = sbr.rel (0) target = $region5
    $region4: #{tpu_custom_call.1} parent=1 // pred_region
      _
    $region5: #{tpu_custom_call.1} parent=1 // pred_fallthru
      _
    // Predicated region
    $region6: #{tpu_custom_call.1} parent=1 // pred_check
      _
    $region7: #{tpu_custom_call.1} parent=1 // pred_check_branch
      %18 = sbr.rel (0) target = $region9
    $region8: #{tpu_custom_call.1} parent=1 // pred_region
      _
    $region9: #{tpu_custom_call.1} parent=1 // pred_fallthru
      _
    // Predicated region
    $region10: #{tpu_custom_call.1} parent=1 // pred_check
      _
    $region11: #{tpu_custom_call.1} parent=1 // pred_check_branch
      %20 = sbr.rel (0) target = $region13
    $region12: #{tpu_custom_call.1} parent=1 // pred_region
      _
    $region13: #{tpu_custom_call.1} parent=1 // pred_fallthru
      _
    // Predicated region
    $region14: #{tpu_custom_call.1} parent=1 // pred_check
      _
    $region15: #{tpu_custom_call.1} parent=1 // pred_check_branch
      %22 = sbr.rel (0) target = $region17
    $region16: #{tpu_custom_call.1} parent=1 // pred_region
      %s24 = ssub.s32 2048, 2048
      %25 = vsyncadd [#allocation3], %s24
      %s26 = sshll.u32 [#allocation2], 4
      %s27 = int_to_ptr.vmem [resolvable:$true] %s26
      %32 = dma.hbm_to_vmem [thread:$0]  %s3, 2048, %s27, [#allocation3], 128, 128, 8
    $region17: #{tpu_custom_call.1} parent=1 // pred_fallthru
      _
    // Predicated region
    $region18: #{tpu_custom_call.1} parent=1 // pred_check
      _
    $region19: #{tpu_custom_call.1} parent=1 // pred_check_branch
      %34 = sbr.rel (0) target = $region21
    $region20: #{tpu_custom_call.1} parent=1 // pred_region
      _
    $region21: #{tpu_custom_call.1} parent=1 // pred_fallthru
      _
    // Predicated region
    $region22: #{tpu_custom_call.1} parent=1 // pred_check
      _
    $region23: #{tpu_custom_call.1} parent=1 // pred_check_branch
      %36 = sbr.rel (0) target = $region25
    $region24: #{tpu_custom_call.1} parent=1 // pred_region
      %s38 = ssub.s32 2048, 2048
      %39 = vsyncadd [#allocation6], %s38
      %s40 = sshll.u32 [#allocation5], 4
      %s41 = int_to_ptr.vmem [resolvable:$true] %s40
      %46 = dma.hbm_to_vmem [thread:$0]  %s5, 2048, %s41, [#allocation6], 128, 128, 8
    $region25: #{tpu_custom_call.1} parent=1 // pred_fallthru
      _
    // Predicated region
    $region26: #{tpu_custom_call.1} parent=1 // pred_check
      _
    $region27: #{tpu_custom_call.1} parent=1 // pred_check_branch
      %48 = sbr.rel (0) target = $region29
    $region28: #{tpu_custom_call.1} parent=1 // pred_region
      _
    $region29: #{tpu_custom_call.1} parent=1 // pred_fallthru
      _
    // Predicated region
    $region30: #{tpu_custom_call.1} parent=1 // pred_check
      _
    $region31: #{tpu_custom_call.1} parent=1 // pred_check_branch
      %50 = sbr.rel (0) target = $region33
    $region32: #{tpu_custom_call.1} parent=1 // pred_region
      %51 = dma.done [#allocation3], 2048
    $region33: #{tpu_custom_call.1} parent=1 // pred_fallthru
      _
    // Predicated region
    $region34: #{tpu_custom_call.1} parent=1 // pred_check
      _
    $region35: #{tpu_custom_call.1} parent=1 // pred_check_branch
      %53 = sbr.rel (0) target = $region37
    $region36: #{tpu_custom_call.1} parent=1 // pred_region
      %54 = dma.done [#allocation6], 2048
    $region37: #{tpu_custom_call.1} parent=1 // pred_fallthru
      _
    %v55 = vld [vmem:[%s0] sm:$0xff]
    %v56 = vld [vmem:[%s2] sm:$0x1]
    %v58 = vlaneseq
    %v59 = vshrl.u32 %v58, 7
    %v60 = vsub.s32 0, %v59
    %v61 = vrot.slane %v56, %v60
    %v63 = vld [vmem:[%s1] sm:$0x1]
    %65 = vset.pattern.permute.xlu0 0
    %66 = vperm.xlu0 %65, %v55
    %v67 = vpop.permute.xlu0 %66
    %v69 = vlaneseq
    %v70 = vshrl.u32 %v69, 7
    %v71 = vsub.s32 0, %v70
    %v72 = vrot.slane %v63, %v71
    %v73 = vmul.f32 %v67, %v72
    %v74 = vadd.f32 %v61, %v73
    %v75 = vld [vmem:[%s1 + $0x1] sm:$0x1]
    %76 = vset.pattern.permute.xlu0 1
    %77 = vperm.xlu0 %76, %v55
    %v78 = vpop.permute.xlu0 %77
    %v80 = vlaneseq
    %v81 = vshrl.u32 %v80, 7
    %v82 = vsub.s32 0, %v81
    %v83 = vrot.slane %v75, %v82
    %v84 = vmul.f32 %v78, %v83
    %v85 = vadd.f32 %v74, %v84
    %v86 = vld [vmem:[%s1 + $0x2] sm:$0x1]
    %87 = vset.pattern.permute.xlu0 2
    %88 = vperm.xlu0 %87, %v55
    %v89 = vpop.permute.xlu0 %88
    %v91 = vlaneseq
    %v92 = vshrl.u32 %v91, 7
    %v93 = vsub.s32 0, %v92
    %v94 = vrot.slane %v86, %v93
    %v95 = vmul.f32 %v89, %v94
    %v96 = vadd.f32 %v85, %v95
    %v97 = vld [vmem:[%s1 + $0x3] sm:$0x1]
    %98 = vset.pattern.permute.xlu0 3
    %99 = vperm.xlu0 %98, %v55
    %v100 = vpop.permute.xlu0 %99
    %v102 = vlaneseq
    %v103 = vshrl.u32 %v102, 7
    %v104 = vsub.s32 0, %v103
    %v105 = vrot.slane %v97, %v104
    %v106 = vmul.f32 %v100, %v105
    %v107 = vadd.f32 %v96, %v106
    %v108 = vmax.f32 %v107, 0.0
    %v109 = vld [vmem:[#allocation2] sm:$0xff]
    %v110 = vld [vmem:[#allocation2 + $0x8] sm:$0xff]
    %v111 = vld [vmem:[#allocation2 + $0x10] sm:$0xff]
    %v112 = vld [vmem:[#allocation2 + $0x18] sm:$0xff]
    %v113 = vld [vmem:[#allocation2 + $0x20] sm:$0xff]
    %v114 = vld [vmem:[#allocation2 + $0x28] sm:$0xff]
    %v115 = vld [vmem:[#allocation2 + $0x30] sm:$0xff]
    %v116 = vld [vmem:[#allocation2 + $0x38] sm:$0xff]
    %v117 = vld [vmem:[#allocation2 + $0x40] sm:$0xff]
    %v118 = vld [vmem:[#allocation2 + $0x48] sm:$0xff]
    %v119 = vld [vmem:[#allocation2 + $0x50] sm:$0xff]
    %v120 = vld [vmem:[#allocation2 + $0x58] sm:$0xff]
    %v121 = vld [vmem:[#allocation2 + $0x60] sm:$0xff]
    %v122 = vld [vmem:[#allocation2 + $0x68] sm:$0xff]
    %v123 = vld [vmem:[#allocation2 + $0x70] sm:$0xff]
    %v124 = vld [vmem:[#allocation2 + $0x78] sm:$0xff]
    %v125 = vld [vmem:[%s4] sm:$0x1]
    %v127 = vlaneseq
    %v128 = vshrl.u32 %v127, 7
    %v129 = vsub.s32 0, %v128
    %v130 = vrot.slane %v125, %v129
    %132 = vmatprep.subr.mxu0 0.0
    %133 = vmatpush1.msra.mxu0 %v109
    %134 = vmatprep.subr.mxu0 0.0
    %135 = vmatpush1.msra.mxu0 %v110
    %136 = vmatprep.subr.mxu0 0.0
    %137 = vmatpush1.msra.mxu0 %v111
    %138 = vmatprep.subr.mxu0 0.0
    %139 = vmatpush1.msra.mxu0 %v112
    %140 = vmatprep.subr.mxu0 0.0
    %141 = vmatpush1.msra.mxu0 %v113
    %142 = vmatprep.subr.mxu0 0.0
    %143 = vmatpush1.msra.mxu0 %v114
    %144 = vmatprep.subr.mxu0 0.0
    %145 = vmatpush1.msra.mxu0 %v115
    %146 = vmatprep.subr.mxu0 0.0
    %147 = vmatpush1.msra.mxu0 %v116
    %148 = vmatprep.subr.mxu0 0.0
    %149 = vmatpush1.msra.mxu0 %v117
    %150 = vmatprep.subr.mxu0 0.0
    %151 = vmatpush1.msra.mxu0 %v118
    %152 = vmatprep.subr.mxu0 0.0
    %153 = vmatpush1.msra.mxu0 %v119
    %154 = vmatprep.subr.mxu0 0.0
    %155 = vmatpush1.msra.mxu0 %v120
    %156 = vmatprep.subr.mxu0 0.0
    %157 = vmatpush1.msra.mxu0 %v121
    %158 = vmatprep.subr.mxu0 0.0
    %159 = vmatpush1.msra.mxu0 %v122
    %160 = vmatprep.subr.mxu0 0.0
    %161 = vmatpush1.msra.mxu0 %v123
    %162 = vmatprep.subr.mxu0 0.0
    %163 = vmatpush1.msra.mxu0 %v124
    %164 = vmatprep.subr.mxu0 0.0
    %165 = vmatpush1.msra.mxu0 0.0
    %166 = vmatprep.subr.mxu0 0.0
    %167 = vmatpush1.msra.mxu0 0.0
    %168 = vmatprep.subr.mxu0 0.0
    %169 = vmatpush1.msra.mxu0 0.0
    %170 = vmatprep.subr.mxu0 0.0
    %171 = vmatpush1.msra.mxu0 0.0
    %172 = vmatprep.subr.mxu0 0.0
    %173 = vmatpush1.msra.mxu0 0.0
    %174 = vmatprep.subr.mxu0 0.0
    %175 = vmatpush1.msra.mxu0 0.0
    %176 = vmatprep.subr.mxu0 0.0
    %177 = vmatpush1.msra.mxu0 0.0
    %178 = vmatprep.subr.mxu0 0.0
    %179 = vmatpush1.msra.mxu0 0.0
    %180 = vmatprep.subr.mxu0 0.0
    %181 = vmatpush1.msra.mxu0 0.0
    %182 = vmatprep.subr.mxu0 0.0
    %183 = vmatpush1.msra.mxu0 0.0
    %184 = vmatprep.subr.mxu0 0.0
    %185 = vmatpush1.msra.mxu0 0.0
    %186 = vmatprep.subr.mxu0 0.0
    %187 = vmatpush1.msra.mxu0 0.0
    %188 = vmatprep.subr.mxu0 0.0
    %189 = vmatpush1.msra.mxu0 0.0
    %190 = vmatprep.subr.mxu0 0.0
    %191 = vmatpush1.msra.mxu0 0.0
    %192 = vmatprep.subr.mxu0 0.0
    %193 = vmatpush1.msra.mxu0 0.0
    %194 = vmatprep.subr.mxu0 0.0
    %195 = vmatpush1.msra.mxu0 0.0
    %196 = vmatprep.mubr.f32.mxu0 0.0
    %197 = vmatmul.mubr.f32.gmra.mrb[0].mxu0 %v108
    %v198 = vpop.f32.mrb[0].mxu0
    %v199 = vadd.f32 %v130, %v198
    %v200 = vpop.f32.mrb[0].mxu0
    %201 = vdwg.mxu0
    %v202 = vmax.f32 %v199, 0.0
    %v203 = vld [vmem:[#allocation5] sm:$0xff]
    %v204 = vld [vmem:[#allocation5 + $0x8] sm:$0xff]
    %v205 = vld [vmem:[#allocation5 + $0x10] sm:$0xff]
    %v206 = vld [vmem:[#allocation5 + $0x18] sm:$0xff]
    %v207 = vld [vmem:[#allocation5 + $0x20] sm:$0xff]
    %v208 = vld [vmem:[#allocation5 + $0x28] sm:$0xff]
    %v209 = vld [vmem:[#allocation5 + $0x30] sm:$0xff]
    %v210 = vld [vmem:[#allocation5 + $0x38] sm:$0xff]
    %v211 = vld [vmem:[#allocation5 + $0x40] sm:$0xff]
    %v212 = vld [vmem:[#allocation5 + $0x48] sm:$0xff]
    %v213 = vld [vmem:[#allocation5 + $0x50] sm:$0xff]
    %v214 = vld [vmem:[#allocation5 + $0x58] sm:$0xff]
    %v215 = vld [vmem:[#allocation5 + $0x60] sm:$0xff]
    %v216 = vld [vmem:[#allocation5 + $0x68] sm:$0xff]
    %v217 = vld [vmem:[#allocation5 + $0x70] sm:$0xff]
    %v218 = vld [vmem:[#allocation5 + $0x78] sm:$0xff]
    %v219 = vld [vmem:[%s6] sm:$0x1]
    %v221 = vlaneseq
    %v222 = vshrl.u32 %v221, 7
    %v223 = vsub.s32 0, %v222
    %v224 = vrot.slane %v219, %v223
    %226 = vmatprep.subr.mxu0 0.0
    %227 = vmatpush1.msra.mxu0 %v203
    %228 = vmatprep.subr.mxu0 0.0
    %229 = vmatpush1.msra.mxu0 %v204
    %230 = vmatprep.subr.mxu0 0.0
    %231 = vmatpush1.msra.mxu0 %v205
    %232 = vmatprep.subr.mxu0 0.0
    %233 = vmatpush1.msra.mxu0 %v206
    %234 = vmatprep.subr.mxu0 0.0
    %235 = vmatpush1.msra.mxu0 %v207
    %236 = vmatprep.subr.mxu0 0.0
    %237 = vmatpush1.msra.mxu0 %v208
    %238 = vmatprep.subr.mxu0 0.0
    %239 = vmatpush1.msra.mxu0 %v209
    %240 = vmatprep.subr.mxu0 0.0
    %241 = vmatpush1.msra.mxu0 %v210
    %242 = vmatprep.subr.mxu0 0.0
    %243 = vmatpush1.msra.mxu0 %v211
    %244 = vmatprep.subr.mxu0 0.0
    %245 = vmatpush1.msra.mxu0 %v212
    %246 = vmatprep.subr.mxu0 0.0
    %247 = vmatpush1.msra.mxu0 %v213
    %248 = vmatprep.subr.mxu0 0.0
    %249 = vmatpush1.msra.mxu0 %v214
    %250 = vmatprep.subr.mxu0 0.0
    %251 = vmatpush1.msra.mxu0 %v215
    %252 = vmatprep.subr.mxu0 0.0
    %253 = vmatpush1.msra.mxu0 %v216
    %254 = vmatprep.subr.mxu0 0.0
    %255 = vmatpush1.msra.mxu0 %v217
    %256 = vmatprep.subr.mxu0 0.0
    %257 = vmatpush1.msra.mxu0 %v218
    %258 = vmatprep.subr.mxu0 0.0
    %259 = vmatpush1.msra.mxu0 0.0
    %260 = vmatprep.subr.mxu0 0.0
    %261 = vmatpush1.msra.mxu0 0.0
    %262 = vmatprep.subr.mxu0 0.0
    %263 = vmatpush1.msra.mxu0 0.0
    %264 = vmatprep.subr.mxu0 0.0
    %265 = vmatpush1.msra.mxu0 0.0
    %266 = vmatprep.subr.mxu0 0.0
    %267 = vmatpush1.msra.mxu0 0.0
    %268 = vmatprep.subr.mxu0 0.0
    %269 = vmatpush1.msra.mxu0 0.0
    %270 = vmatprep.subr.mxu0 0.0
    %271 = vmatpush1.msra.mxu0 0.0
    %272 = vmatprep.subr.mxu0 0.0
    %273 = vmatpush1.msra.mxu0 0.0
    %274 = vmatprep.subr.mxu0 0.0
    %275 = vmatpush1.msra.mxu0 0.0
    %276 = vmatprep.subr.mxu0 0.0
    %277 = vmatpush1.msra.mxu0 0.0
    %278 = vmatprep.subr.mxu0 0.0
    %279 = vmatpush1.msra.mxu0 0.0
    %280 = vmatprep.subr.mxu0 0.0
    %281 = vmatpush1.msra.mxu0 0.0
    %282 = vmatprep.subr.mxu0 0.0
    %283 = vmatpush1.msra.mxu0 0.0
    %284 = vmatprep.subr.mxu0 0.0
    %285 = vmatpush1.msra.mxu0 0.0
    %286 = vmatprep.subr.mxu0 0.0
    %287 = vmatpush1.msra.mxu0 0.0
    %288 = vmatprep.subr.mxu0 0.0
    %289 = vmatpush1.msra.mxu0 0.0
    %290 = vmatprep.mubr.f32.mxu0 0.0
    %291 = vmatmul.mubr.f32.gmra.mrb[0].mxu0 %v202
    %v292 = vpop.f32.mrb[0].mxu0
    %v293 = vadd.f32 %v224, %v292
    %v294 = vpop.f32.mrb[0].mxu0
    %295 = vdwg.mxu0
    %296 = vst [vmem:[#allocation7] sm:$0xff] %v293
    // Predicated region
    $region38: #{tpu_custom_call.1} parent=1 // pred_check
      _
    $region39: #{tpu_custom_call.1} parent=1 // pred_check_branch
      %298 = sbr.rel (0) target = $region41
    $region40: #{tpu_custom_call.1} parent=1 // pred_region
      %s300 = ssub.s32 128, 128
      %301 = vsyncadd [#allocation4], %s300
      %s303 = sshll.u32 [#allocation7], 4
      %s304 = int_to_ptr.vmem [resolvable:$true] %s303
      %306 = dma.vmem_to_hbm [thread:$0]  %s304, 128, %s7, [#allocation4]
    $region41: #{tpu_custom_call.1} parent=1 // pred_fallthru
      _
    // Predicated region
    $region42: #{tpu_custom_call.1} parent=1 // pred_check
      _
    $region43: #{tpu_custom_call.1} parent=1 // pred_check_branch
      %308 = sbr.rel (0) target = $region45
    $region44: #{tpu_custom_call.1} parent=1 // pred_region
      %309 = dma.done [#allocation4], 128
    $region45: #{tpu_custom_call.1} parent=1 // pred_fallthru
      _
    %310 = vsyncpa [#allocation3], 1
    %311 = vsyncpa [#allocation6], 1
    %312 = vsyncpa [#allocation4], 1

</llo_original>
